<compile_context>
chip_gen: v7x
topology: tpu7x:2x2x1
jax: 0.10.0
libtpu: 0.0.40
codegen_flags: <defaults>
</compile_context>

<pallas_src>
import jax
import jax.numpy as jnp
from jax import lax
from jax.experimental import pallas as pl
from jax.experimental.pallas import tpu as pltpu

_TN_MAX = 512    # row tile cap (sublane axis), multiple of 8
_TM_MAX = 2048   # col tile cap (lane axis), multiple of 128 -> lane-dense


def _round_up(x, m):
    return ((x + m - 1) // m) * m


def _pick_tile(dim, cap, align):
    """Largest legal tile <= cap.

    If the whole dim fits, use it (a block equal to the full dim is legal for
    any size).  Otherwise pick a balanced `align`-multiple tile so the last
    (masked) boundary block has minimal overhang.
    """
    if dim <= cap:
        return dim
    n_tiles = pl.cdiv(dim, cap)
    return _round_up(pl.cdiv(dim, n_tiles), align)


# ----------------------------------------------------------------------------
# Pallas kernel: one (tn, tm) tile of the Gaussian kernel for one batch row.
# ----------------------------------------------------------------------------
def _gaussian_kernel_body(params_ref, t1_ref, t2_ref, out_ref):
    # params_ref: SMEM (3,)        -> [-0.5/lengthscale**2, sigma**2, eps]
    # t1_ref:     VMEM (1, tn, 1)     t1 slice, N on sublanes (no relayout)
    # t2_ref:     VMEM (1, 1, tm)     t2 slice, M on lanes
    # out_ref:    VMEM (1, tn, tm)
    neg_half_inv_ls2 = params_ref[0]
    sigma_sq = params_ref[1]
    eps = params_ref[2]

    tn = out_ref.shape[1]
    tm = out_ref.shape[2]

    d = t1_ref[0, :, :] - t2_ref[0, :, :]          # (tn, tm) VPU broadcast
    val = sigma_sq * jnp.exp(neg_half_inv_ls2 * (d * d))

    # epsilon * I: only when eps != 0 and only on tiles crossed by the GLOBAL
    # diagonal.  Fused into a single store (no read-modify-write), single
    # iota-difference mask: global row == col  <=>  i_local - j_local == col0-row0.
    i = pl.program_id(1)
    j = pl.program_id(2)
    row0 = i * tn
    col0 = j * tm
    diag_in_tile = jnp.logical_and(row0 < col0 + tm, col0 < row0 + tn)
    do_diag = jnp.logical_and(eps != 0.0, diag_in_tile)

    @pl.when(do_diag)
    def _():
        diff = (lax.broadcasted_iota(jnp.int32, (tn, tm), 0)
                - lax.broadcasted_iota(jnp.int32, (tn, tm), 1))
        bump = jnp.where(diff == (col0 - row0), eps, jnp.float32(0.0))
        out_ref[0, :, :] = (val + bump).astype(out_ref.dtype)

    @pl.when(jnp.logical_not(do_diag))
    def _():
        out_ref[0, :, :] = val.astype(out_ref.dtype)


def _pallas_gaussian_kernel(params, t1_col, t2_row, tn, tm, out_dtype):
    """params: (3,) f32; t1_col: (B, N, 1); t2_row: (B, 1, M) -> (B, N, M)."""
    b, n, _ = t1_col.shape
    _, _, m = t2_row.shape
    grid = (b, pl.cdiv(n, tn), pl.cdiv(m, tm))
    return pl.pallas_call(
        _gaussian_kernel_body,
        out_shape=jax.ShapeDtypeStruct((b, n, m), out_dtype),
        grid=grid,
        in_specs=[
            pl.BlockSpec(memory_space=pltpu.MemorySpace.SMEM),      # params
            pl.BlockSpec((1, tn, 1), lambda b, i, j: (b, i, 0)),    # t1 column
            pl.BlockSpec((1, 1, tm), lambda b, i, j: (b, 0, j)),    # t2 row
        ],
        out_specs=pl.BlockSpec((1, tn, tm), lambda b, i, j: (b, i, j)),
        compiler_params=pltpu.CompilerParams(
            dimension_semantics=("parallel", "parallel", "parallel"),
            vmem_limit_bytes=int(32 * 2**20)),   # > v5e's 16 MiB default
    )(params, t1_col, t2_row)


# ----------------------------------------------------------------------------
# Module-equivalent wrapper (forward pass of GaussianKernel).
# ----------------------------------------------------------------------------
class GaussianKernelPallas:
    """Pallas equivalent of the PyTorch GaussianKernel module."""

    def __init__(self, lengthscale=1.0, sigma=1.0, epsilon=0.001):
        # Learnable scalars in torch; deterministic init here.
        self.lengthscale = jnp.float32(lengthscale)
        self.sigma = jnp.float32(sigma)
        self.epsilon = jnp.float32(epsilon)

    def __call__(self, t1, t2, same=None, out_dtype=None):
        assert t1.ndim == t2.ndim, (
            "GaussianKernel: inputs must have the same number of dimensions")
        t1 = jnp.asarray(t1, jnp.float32)
        t2 = jnp.asarray(t2, jnp.float32)

        # torch.equal(t1, t2) branch, resolved WITHOUT a host sync:
        # explicit caller flag, or Python object identity as the default.
        # TODO(synk): a value-level equality check would force a blocking
        # device->host sync / break jit; traced callers must pass same=True
        # explicitly when t1 and t2 are equal-by-value but distinct objects.
        if same is None:
            same = t1 is t2
        same = bool(same)

        # same=True path stays f32: eps=1e-3 is below bf16 ULP near sigma^2,
        # so the jitter (and the Cholesky) would be lost in bf16.
        if same or out_dtype is None:
            out_dtype = jnp.float32   # pass out_dtype=bf16 for the cross case
                                      # to halve HBM write bytes.

        eps_val = self.epsilon if same else jnp.float32(0.0)
        # Fold scalars: k = sigma^2 * exp((-0.5/ls^2) * d^2)  (no in-kernel div)
        params = jnp.stack([
            jnp.float32(-0.5) / (self.lengthscale * self.lengthscale),
            self.sigma * self.sigma,
            eps_val,
        ]).astype(jnp.float32)

        # Flatten leading batch dims.
        if t1.ndim == 1:
            batch_shape = ()
            t1_b = t1[None, :]
            t2_b = t2[None, :]
        else:
            batch_shape = t1.shape[:-1]
            t1_b = t1.reshape(-1, t1.shape[-1])
            t2_b = t2.reshape(-1, t2.shape[-1])

        b, n = t1_b.shape
        _, m = t2_b.shape

        # Adaptive lane-dense tiles; exact (B, N, M) output, no padding or
        # post-kernel slice.  Boundary blocks are masked by Pallas; their
        # overhang is computed from unspecified data but never re-read.
        tn = _pick_tile(n, _TN_MAX, 8)
        tm = _pick_tile(m, _TM_MAX, 128)
        # v7x: avoid collapsing the grid to a single step when B == 1 so both
        # TensorCores get work (all grid axes are "parallel").
        if b * pl.cdiv(n, tn) * pl.cdiv(m, tm) < 2 and n >= 64:
            tn = _round_up(pl.cdiv(n, 2), 8)

        t1_col = t1_b[:, :, None]   # (B, N, 1)  N on sublanes
        t2_row = t2_b[:, None, :]   # (B, 1, M)  M on lanes

        gram = _pallas_gaussian_kernel(params, t1_col, t2_row, tn, tm, out_dtype)
        if t1.ndim == 1:
            gram = gram[0]                                   # (N, M)
        else:
            gram = gram.reshape(batch_shape + (n, m))        # (..., N, M)

        if same:
            # TODO(synk): dense Cholesky has no Pallas TPU primitive; done in JAX.
            chol = jnp.linalg.cholesky(gram.astype(jnp.float32)).astype(gram.dtype)
            return gram, chol
        return gram, None


# ----------------------------------------------------------------------------
# Pure-JAX reference for correctness checking.
# ----------------------------------------------------------------------------
def _reference(t1, t2, lengthscale, sigma, epsilon, same):
    t1 = jnp.asarray(t1, jnp.float32)
    t2 = jnp.asarray(t2, jnp.float32)
    if t1.ndim == 1:
        d = (t1[:, None] - t2[None, :]) / lengthscale
    else:
        d = (t1[..., :, None] - t2[..., None, :]) / lengthscale
    k = (sigma ** 2) * jnp.exp(-0.5 * d ** 2)
    if same:
        k = k + epsilon * jnp.eye(t1.shape[-1], dtype=jnp.float32)
    return k


if __name__ == "__main__":
    key = jax.random.PRNGKey(0)
    k1, k2 = jax.random.split(key)

    B, N, M = 2, 8, 8  # small batch of GPs, sequence length 8

    t = jnp.sort(jax.random.uniform(k1, (B, N), dtype=jnp.float32) * 5.0, axis=-1)
    t_other = jnp.sort(
        jax.random.uniform(k2, (B, M), dtype=jnp.float32) * 5.0, axis=-1)

    module = GaussianKernelPallas(lengthscale=0.7, sigma=1.3, epsilon=0.001)

    # Case 1: t1 == t2 (same object) -> kernel + eps*I + Cholesky.
    gram_same, chol = module(t, t)
    gram_same = jax.block_until_ready(gram_same)
    chol = jax.block_until_ready(chol)

    # Case 2: t1 != t2 -> kernel matrix only.
    gram_cross, none_out = module(t, t_other)
    gram_cross = jax.block_until_ready(gram_cross)
    assert none_out is None

    # Case 3: 1-D inputs (same object so the eps branch fires).
    t0 = t[0]
    gram_1d, chol_1d = module(t0, t0)
    gram_1d = jax.block_until_ready(gram_1d)

    # Case 4: bf16 output path for the cross-kernel (HBM-write-bound regime).
    gram_bf16, _ = module(t, t_other, out_dtype=jnp.bfloat16)
    gram_bf16 = jax.block_until_ready(gram_bf16)

    # Case 5: multi-row-tile case (boundary blocks + global-diagonal eps).
    Nm = 600
    t_mid = jnp.linspace(0.0, 600.0, Nm, dtype=jnp.float32)[None, :]  # (1, 600)
    gram_mid, chol_mid = module(t_mid, t_mid)
    gram_mid = jax.block_until_ready(gram_mid)
    chol_mid = jax.block_until_ready(chol_mid)

    # Case 6: rectangular cross kernel with non-128-multiple M (exact output,
    # no padding / slice).
    Mo = 333
    t_cols = jnp.linspace(0.0, 600.0, Mo, dtype=jnp.float32)[None, :]  # (1, 333)
    gram_rect, _ = module(t_mid, t_cols)
    gram_rect = jax.block_until_ready(gram_rect)

    # Validate against the pure-JAX reference.
    ref_same = _reference(t, t, module.lengthscale, module.sigma,
                          module.epsilon, same=True)
    ref_cross = _reference(t, t_other, module.lengthscale, module.sigma,
                           module.epsilon, same=False)
    ref_1d = _reference(t0, t0, module.lengthscale, module.sigma,
                        module.epsilon, same=True)
    ref_mid = _reference(t_mid, t_mid, module.lengthscale, module.sigma,
                         module.epsilon, same=True)
    ref_rect = _reference(t_mid, t_cols, module.lengthscale, module.sigma,
                          module.epsilon, same=False)

    assert gram_same.shape == (B, N, N)
    assert gram_cross.shape == (B, N, M)
    assert gram_1d.shape == (N, N)
    assert gram_bf16.shape == (B, N, M) and gram_bf16.dtype == jnp.bfloat16
    assert gram_mid.shape == (1, Nm, Nm)
    assert gram_rect.shape == (1, Nm, Mo)

    assert jnp.allclose(gram_same, ref_same, atol=1e-5, rtol=1e-5)
    assert jnp.allclose(gram_cross, ref_cross, atol=1e-5, rtol=1e-5)
    assert jnp.allclose(gram_1d, ref_1d, atol=1e-5, rtol=1e-5)
    assert jnp.allclose(gram_bf16.astype(jnp.float32), ref_cross, atol=2e-2)
    assert jnp.allclose(gram_mid, ref_mid, atol=1e-5, rtol=1e-5)
    assert jnp.allclose(gram_rect, ref_rect, atol=1e-5, rtol=1e-5)
    assert bool(jnp.all(jnp.isfinite(chol_mid)))

    # Cholesky sanity on the small batched case: L @ L^T == K.
    recon = jnp.einsum("bij,bkj->bik", chol, chol)
    assert jnp.allclose(recon, gram_same, atol=1e-4, rtol=1e-4)

    print("KERNEL_OK")
</pallas_src>

<mosaic_0001>
module attributes {stable_mosaic.version = 11 : i64} {
  func.func @_gaussian_kernel_body(%arg0: i32, %arg1: i32, %arg2: i32, %arg3: memref<3xf32, #tpu.memory_space<smem>>, %arg4: memref<1x8x1xf32, #tpu.memory_space<vmem>>, %arg5: memref<1x1x8xf32, #tpu.memory_space<vmem>>, %arg6: memref<1x8x8xf32, #tpu.memory_space<vmem>>) attributes {dimension_semantics = [#tpu.dimension_semantics<parallel>, #tpu.dimension_semantics<parallel>, #tpu.dimension_semantics<parallel>], iteration_bounds = array<i64: 2, 1, 1>, scalar_prefetch = 0 : i64, scratch_operands = 0 : i64, tpu.core_type = #tpu.core_type<tc>, window_params = [{transform_indices = @transform_0, window_bounds = array<i64: 3>}, {transform_indices = @transform_1, window_bounds = array<i64: 1, 8, 1>}, {transform_indices = @transform_2, window_bounds = array<i64: 1, 1, 8>}, {transform_indices = @transform_3, window_bounds = array<i64: 1, 8, 8>}]} {
    %c0 = arith.constant 0 : index
    %0 = memref.load %arg3[%c0] : memref<3xf32, #tpu.memory_space<smem>>
    %c1 = arith.constant 1 : index
    %1 = memref.load %arg3[%c1] : memref<3xf32, #tpu.memory_space<smem>>
    %c2 = arith.constant 2 : index
    %2 = memref.load %arg3[%c2] : memref<3xf32, #tpu.memory_space<smem>>
    %c0_0 = arith.constant 0 : index
    %c0_1 = arith.constant 0 : index
    %c0_2 = arith.constant 0 : index
    %3 = vector.load %arg4[%c0_0, %c0_1, %c0_2] : memref<1x8x1xf32, #tpu.memory_space<vmem>>, vector<1x8x1xf32>
    %4 = vector.shape_cast %3 : vector<1x8x1xf32> to vector<8x1xf32>
    %c0_3 = arith.constant 0 : index
    %c0_4 = arith.constant 0 : index
    %c0_5 = arith.constant 0 : index
    %5 = vector.load %arg5[%c0_3, %c0_4, %c0_5] : memref<1x1x8xf32, #tpu.memory_space<vmem>>, vector<1x1x8xf32>
    %6 = vector.shape_cast %5 : vector<1x1x8xf32> to vector<1x8xf32>
    %7 = vector.broadcast %4 : vector<8x1xf32> to vector<8x8xf32>
    %8 = vector.broadcast %6 : vector<1x8xf32> to vector<8x8xf32>
    %9 = arith.subf %7, %8 : vector<8x8xf32>
    %10 = arith.mulf %9, %9 : vector<8x8xf32>
    %11 = vector.broadcast %0 : f32 to vector<8x8xf32>
    %12 = arith.mulf %11, %10 : vector<8x8xf32>
    %13 = math.exp %12 : vector<8x8xf32>
    %14 = vector.broadcast %1 : f32 to vector<8x8xf32>
    %15 = arith.mulf %14, %13 : vector<8x8xf32>
    %c8_i32 = arith.constant 8 : i32
    %16 = arith.muli %arg1, %c8_i32 : i32
    %c8_i32_6 = arith.constant 8 : i32
    %17 = arith.muli %arg2, %c8_i32_6 : i32
    %c8_i32_7 = arith.constant 8 : i32
    %18 = arith.addi %17, %c8_i32_7 : i32
    %19 = arith.cmpi slt, %16, %18 : i32
    %c8_i32_8 = arith.constant 8 : i32
    %20 = arith.addi %16, %c8_i32_8 : i32
    %21 = arith.cmpi slt, %17, %20 : i32
    %22 = arith.andi %19, %21 : i1
    %cst = arith.constant 0.000000e+00 : f32
    %23 = arith.cmpf one, %2, %cst : f32
    %24 = arith.andi %23, %22 : i1
    %25 = arith.extui %24 : i1 to i32
    %c0_i32 = arith.constant 0 : i32
    %26 = arith.cmpi ne, %25, %c0_i32 : i32
    scf.if %26 {
      %30 = tpu.iota {dimensions = array<i32: 0>} : vector<8x8xi32>
      %31 = tpu.iota {dimensions = array<i32: 1>} : vector<8x8xi32>
      %32 = arith.subi %30, %31 : vector<8x8xi32>
      %33 = arith.subi %17, %16 : i32
      %34 = vector.broadcast %33 : i32 to vector<8x8xi32>
      %35 = arith.cmpi eq, %32, %34 : vector<8x8xi32>
      %cst_10 = arith.constant 0.000000e+00 : f32
      %36 = vector.broadcast %2 : f32 to vector<8x8xf32>
      %37 = vector.broadcast %cst_10 : f32 to vector<8x8xf32>
      %38 = arith.select %35, %36, %37 : vector<8x8xi1>, vector<8x8xf32>
      %39 = arith.addf %15, %38 : vector<8x8xf32>
      %c0_11 = arith.constant 0 : index
      %c0_12 = arith.constant 0 : index
      %c0_13 = arith.constant 0 : index
      %40 = vector.load %arg6[%c0_11, %c0_12, %c0_13] : memref<1x8x8xf32, #tpu.memory_space<vmem>>, vector<1x8x8xf32>
      %41 = vector.shape_cast %40 : vector<1x8x8xf32> to vector<8x8xf32>
      %42 = vector.shape_cast %39 : vector<8x8xf32> to vector<1x8x8xf32>
      tpu.vector_store %arg6[%c0_11, %c0_12, %c0_13], %42 {strides = array<i32>} : memref<1x8x8xf32, #tpu.memory_space<vmem>>, vector<1x8x8xf32>,
    } else {
    }
    %true = arith.constant true
    %27 = arith.xori %24, %true : i1
    %28 = arith.extui %27 : i1 to i32
    %c0_i32_9 = arith.constant 0 : i32
    %29 = arith.cmpi ne, %28, %c0_i32_9 : i32
    scf.if %29 {
      %c0_10 = arith.constant 0 : index
      %c0_11 = arith.constant 0 : index
      %c0_12 = arith.constant 0 : index
      %30 = vector.load %arg6[%c0_10, %c0_11, %c0_12] : memref<1x8x8xf32, #tpu.memory_space<vmem>>, vector<1x8x8xf32>
      %31 = vector.shape_cast %30 : vector<1x8x8xf32> to vector<8x8xf32>
      %32 = vector.shape_cast %15 : vector<8x8xf32> to vector<1x8x8xf32>
      tpu.vector_store %arg6[%c0_10, %c0_11, %c0_12], %32 {strides = array<i32>} : memref<1x8x8xf32, #tpu.memory_space<vmem>>, vector<1x8x8xf32>,
    } else {
    }
    return
  }
  func.func @transform_0(%arg0: i32, %arg1: i32, %arg2: i32) -> i32 {
    %c0_i32 = arith.constant 0 : i32
    %c0_i32_0 = arith.constant 0 : i32
    return %c0_i32 : i32
  }
  func.func @transform_1(%arg0: i32, %arg1: i32, %arg2: i32) -> (i32, i32, i32) {
    %c0_i32 = arith.constant 0 : i32
    %c0_i32_0 = arith.constant 0 : i32
    return %arg0, %arg1, %c0_i32 : i32, i32, i32
  }
  func.func @transform_2(%arg0: i32, %arg1: i32, %arg2: i32) -> (i32, i32, i32) {
    %c0_i32 = arith.constant 0 : i32
    %c0_i32_0 = arith.constant 0 : i32
    return %arg0, %c0_i32, %arg2 : i32, i32, i32
  }
  func.func @transform_3(%arg0: i32, %arg1: i32, %arg2: i32) -> (i32, i32, i32) {
    %c0_i32 = arith.constant 0 : i32
    return %arg0, %arg1, %arg2 : i32, i32, i32
  }
}

</mosaic_0001>

<llo_original>
// kernel: tpu_custom_call.1
$region0: #{tpu_custom_call.1}
  #allocation0 [shape = 'u32[]', space=smem, size = 0x4, offset = 0x4, fixed_abs, tag = 'smem constant byte address 0x4 - core index']
  #allocation1 [shape = 'u32[144,128]{1,0:T(1,128)}', space=vmem, size = 0x12000, scoped, tag = 'internal scratch']
  %s0 = inlined_call_operand.vmem [shape: f32[3], index: 0, kind: input, shape index: {}]
  %s1 = inlined_call_operand.vmem [shape: f32[2,8,1], index: 1, kind: input, shape index: {}]
  %s2 = inlined_call_operand.vmem [shape: f32[2,1,8], index: 2, kind: input, shape index: {}]
  %s3 = inlined_call_operand.hbm [shape: f32[2,8,8], index: 3, kind: output, shape index: {}]
  %s4 = sld [smem:[#allocation0]]
  $region57: #{tpu_custom_call.1} parent=0
    _
  %s6 = ssub.s32 1, %s4
  %s7 = scalar_select 0, %s6, %s4
  $region1: #{tpu_custom_call.1} parent=0
    #allocation2 [shape = 'u8[512]{0}', space=smem, size = 0x200, scoped, tag = 'input window, operand 0, single buffered']
    #allocation3 [shape = 's32[2]{0}', space=sflag, size = 0x8, scoped, tag = 'scoped memory for tpu_custom_call.1']
    #allocation4 [shape = 's32[2]{0}', space=sflag, size = 0x8, scoped, tag = 'scoped memory for tpu_custom_call.1']
    #allocation5 [shape = 'u8[8192]{0}', space=vmem, size = 0x2000, scoped, tag = 'output window, operand 0']
    %8 = vsyncpa [#allocation4], 0
    %9 = vsyncpa [#allocation3], 0
    %s10 = scalar_lea.sflag [#allocation3], 1
    %11 = vsyncpa %s10, 0
    loop: start=0, step=1, limit=4
    $region2: #{tpu_custom_call.1} parent=1 // loop_pre_header
      _
    $region3: #{tpu_custom_call.1} parent=1 // loop_header
      %s13 = sphi 0, %s17
      %p14 = scmp.ge.s32.totalorder %s13, 4
      %s20 = sphi 0, %s39
      %s21 = sphi 0, %s35
      %s22 = sphi 0, %s31
      %s23 = sphi 0, %s20
      %s24 = sphi 0, %s21
      %s25 = sphi 0, %s22
      %s26 = sphi 0, %s23
      %s27 = sphi 0, %s24
      %s28 = sphi 0, %s25
      %s40 = sphi 0, %s40
      %s42 = sphi 0, %s40
      %s43 = sphi 0, %s42
      %s57 = sphi 0, %s43
      %s65 = sphi 0, %s67
      %s68 = sphi 0, %s65
      %s69 = sphi 0, %s68
      %s85 = sphi 0, %s69
      %s93 = sphi 0, %s95
      %s96 = sphi 0, %s93
      %s97 = sphi 0, %s96
      %s113 = sphi 0, %s97
      %s123 = sphi 0, %s125
      %s126 = sphi 0, %s123
      %s127 = sphi 0, %s126
      %s143 = sphi 0, %s127
    $region4: #{tpu_custom_call.1} parent=1 // loop_header_branch
      %16 = sbr.rel (%p14) target = $region8
    $region5: #{tpu_custom_call.1} parent=1 // loop_body
      %s18 = ssub.s32 %s13, 1
      %s19 = ssub.s32 %s13, 2
      %s29 = sadd.s32 1, %s22
      %p30 = scmp.ge.s32.totalorder %s29, 1
      %s31 = scalar_select %p30, 0, %s29
      %s32 = sadd.s32 1, %s21
      %s33 = scalar_select %p30, %s32, %s21
      %p34 = scmp.ge.s32.totalorder %s33, 1
      %s35 = scalar_select %p34, 0, %s33
      %s36 = sadd.s32 1, %s20
      %s37 = scalar_select %p34, %s36, %s20
      %p38 = scmp.ge.s32.totalorder %s37, 2
      %s39 = scalar_select %p38, 0, %s37
      %s41 = sadd.s32 %s40, 1
      %p44 = scmp.eq.s32.totalorder %s13, 1
      %p45 = scmp.ne.s32.totalorder %s40, %s42
      %p46 = scmp.eq.s32.totalorder %s13, 0
      %p47 = por %p45, %p46
      %p48 = scmp.ne.s32.totalorder %s40, %s42
      %p49 = scmp.eq.s32.totalorder %s18, 1
      %p50 = por %p48, %p49
      %p51 = scmp.ne.s32.totalorder %s42, %s43
      %p52 = scmp.eq.s32.totalorder %s18, 0
      %p53 = por %p51, %p52
      %p54 = scmp.ne.s32.totalorder %s42, %s43
      %p55 = scmp.eq.s32.totalorder %s19, 1
      %p56 = por %p54, %p55
      %p58 = scmp.ne.s32.totalorder %s43, %s57
      %p59 = scmp.eq.s32.totalorder %s19, 0
      %p60 = por %p58, %p59
      %s61 = ssub.s32 %s20, %s39
      %s62 = ssub.s32 %s21, %s35
      %s63 = sor.u32 %s61, %s62
      %p64 = scmp.eq.s32.totalorder %s63, 0
      %s66 = sadd.s32 %s65, 1
      %s67 = scalar_select %p64, %s65, %s66
      %p70 = pneg %p64
      %p71 = scmp.eq.s32.totalorder %s13, 1
      %p72 = por %p70, %p71
      %p73 = scmp.ne.s32.totalorder %s65, %s68
      %p74 = scmp.eq.s32.totalorder %s13, 0
      %p75 = por %p73, %p74
      %p76 = scmp.ne.s32.totalorder %s65, %s68
      %p77 = scmp.eq.s32.totalorder %s18, 1
      %p78 = por %p76, %p77
      %p79 = scmp.ne.s32.totalorder %s68, %s69
      %p80 = scmp.eq.s32.totalorder %s18, 0
      %p81 = por %p79, %p80
      %p82 = scmp.ne.s32.totalorder %s68, %s69
      %p83 = scmp.eq.s32.totalorder %s19, 1
      %p84 = por %p82, %p83
      %p86 = scmp.ne.s32.totalorder %s69, %s85
      %p87 = scmp.eq.s32.totalorder %s19, 0
      %p88 = por %p86, %p87
      %s89 = ssub.s32 %s20, %s39
      %s90 = ssub.s32 %s22, %s31
      %s91 = sor.u32 %s89, %s90
      %p92 = scmp.eq.s32.totalorder %s91, 0
      %s94 = sadd.s32 %s93, 1
      %s95 = scalar_select %p92, %s93, %s94
      %p98 = pneg %p92
      %p99 = scmp.eq.s32.totalorder %s13, 1
      %p100 = por %p98, %p99
      %p101 = scmp.ne.s32.totalorder %s93, %s96
      %p102 = scmp.eq.s32.totalorder %s13, 0
      %p103 = por %p101, %p102
      %p104 = scmp.ne.s32.totalorder %s93, %s96
      %p105 = scmp.eq.s32.totalorder %s18, 1
      %p106 = por %p104, %p105
      %p107 = scmp.ne.s32.totalorder %s96, %s97
      %p108 = scmp.eq.s32.totalorder %s18, 0
      %p109 = por %p107, %p108
      %p110 = scmp.ne.s32.totalorder %s96, %s97
      %p111 = scmp.eq.s32.totalorder %s19, 1
      %p112 = por %p110, %p111
      %p114 = scmp.ne.s32.totalorder %s97, %s113
      %p115 = scmp.eq.s32.totalorder %s19, 0
      %p116 = por %p114, %p115
      %s117 = ssub.s32 %s20, %s39
      %s118 = ssub.s32 %s21, %s35
      %s119 = sor.u32 %s117, %s118
      %s120 = ssub.s32 %s22, %s31
      %s121 = sor.u32 %s119, %s120
      %p122 = scmp.eq.s32.totalorder %s121, 0
      %s124 = sadd.s32 %s123, 1
      %s125 = scalar_select %p122, %s123, %s124
      %p128 = pneg %p122
      %p129 = scmp.eq.s32.totalorder %s13, 1
      %p130 = por %p128, %p129
      %p131 = scmp.ne.s32.totalorder %s123, %s126
      %p132 = scmp.eq.s32.totalorder %s13, 0
      %p133 = por %p131, %p132
      %p134 = scmp.ne.s32.totalorder %s123, %s126
      %p135 = scmp.eq.s32.totalorder %s18, 1
      %p136 = por %p134, %p135
      %p137 = scmp.ne.s32.totalorder %s126, %s127
      %p138 = scmp.eq.s32.totalorder %s18, 0
      %p139 = por %p137, %p138
      %p140 = scmp.ne.s32.totalorder %s126, %s127
      %p141 = scmp.eq.s32.totalorder %s19, 1
      %p142 = por %p140, %p141
      %p144 = scmp.ne.s32.totalorder %s127, %s143
      %p145 = scmp.eq.s32.totalorder %s19, 0
      %p146 = por %p144, %p145
      %p147 = scmp.le.s32.totalorder 1, %s13
      %p148 = scmp.lt.s32.totalorder %s13, 3
      %p149 = pnand %p147, %p148
      %p150 = pneg %p149
      // Predicated region
      $region9: #{tpu_custom_call.1} parent=5 // pred_check
        _
      $region10: #{tpu_custom_call.1} parent=5 // pred_check_branch
        %152 = sbr.rel (%p149) target = $region12
      $region11: #{tpu_custom_call.1} parent=5 // pred_region
        %s153 = ssub.s32 %s13, 1
        // Predicated region
        $region13: #{tpu_custom_call.1} parent=11 // pred_check
          %p154 = pneg %p53
        $region14: #{tpu_custom_call.1} parent=11 // pred_check_branch
          %156 = sbr.rel (%p154) target = $region16
        $region15: #{tpu_custom_call.1} parent=11 // pred_region
          %s158 = ssub.s32 16, 16
          %159 = vsyncadd [#allocation4], %s158
          %s161 = sshll.u32 %s0, 4
          %s162 = int_to_ptr.vmem [resolvable:$true] %s161
          %164 = dma.vmem_to_smem %s162, 16, [#allocation2], [#allocation4]
        $region16: #{tpu_custom_call.1} parent=11 // pred_fallthru
          _
      $region12: #{tpu_custom_call.1} parent=5 // pred_fallthru
        _
      %p165 = scmp.lt.s32.totalorder %s13, 2
      // Predicated region
      $region17: #{tpu_custom_call.1} parent=5 // pred_check
        %p166 = pneg %p165
      $region18: #{tpu_custom_call.1} parent=5 // pred_check_branch
        %168 = sbr.rel (%p166) target = $region20
      $region19: #{tpu_custom_call.1} parent=5 // pred_region
        // Predicated region
        $region21: #{tpu_custom_call.1} parent=19 // pred_check
          %p169 = pneg %p75
        $region22: #{tpu_custom_call.1} parent=19 // pred_check_branch
          %171 = sbr.rel (%p169) target = $region24
        $region23: #{tpu_custom_call.1} parent=19 // pred_region
          %p172 = scmp.lt.s32.totalorder %s20, 1
          %s173 = scalar_select %p172, %s20, 1
          %p174 = scmp.lt.s32.totalorder %s21, 0
          %s175 = scalar_select %p174, %s21, 0
          %s176 = sadd.s32 %s175, %s173
          %s177 = smul.addr %s176, 8
          %s178 = scalar_lea.vmem %s1, %s177
        $region24: #{tpu_custom_call.1} parent=19 // pred_fallthru
          _
        // Predicated region
        $region25: #{tpu_custom_call.1} parent=19 // pred_check
          %p179 = pneg %p103
        $region26: #{tpu_custom_call.1} parent=19 // pred_check_branch
          %181 = sbr.rel (%p179) target = $region28
        $region27: #{tpu_custom_call.1} parent=19 // pred_region
          %p182 = scmp.lt.s32.totalorder %s20, 1
          %s183 = scalar_select %p182, %s20, 1
          %p184 = scmp.lt.s32.totalorder %s22, 0
          %s185 = scalar_select %p184, %s22, 0
          %s186 = sadd.s32 %s185, %s183
          %s187 = scalar_lea.vmem %s2, %s186
        $region28: #{tpu_custom_call.1} parent=19 // pred_fallthru
          _
      $region20: #{tpu_custom_call.1} parent=5 // pred_fallthru
        _
      %p188 = scmp.le.s32.totalorder 1, %s13
      %p189 = scmp.lt.s32.totalorder %s13, 3
      %p190 = pnand %p188, %p189
      %p191 = pneg %p190
      // Predicated region
      $region29: #{tpu_custom_call.1} parent=5 // pred_check
        _
      $region30: #{tpu_custom_call.1} parent=5 // pred_check_branch
        %193 = sbr.rel (%p190) target = $region32
      $region31: #{tpu_custom_call.1} parent=5 // pred_region
        %s194 = ssub.s32 %s13, 1
        // Predicated region
        $region33: #{tpu_custom_call.1} parent=31 // pred_check
          %p195 = pneg %p53
        $region34: #{tpu_custom_call.1} parent=31 // pred_check_branch
          %197 = sbr.rel (%p195) target = $region36
        $region35: #{tpu_custom_call.1} parent=31 // pred_region
          %198 = dma.done [#allocation4], 16
        $region36: #{tpu_custom_call.1} parent=31 // pred_fallthru
          _
        %199 = sfence
        %p200 = pneg %p53
        %p201 = pneg %p50
        %p202 = scmp.lt.s32.totalorder %s23, 1
        %s203 = scalar_select %p202, %s23, 1
        %p204 = scmp.lt.s32.totalorder %s24, 0
        %s205 = scalar_select %p204, %s24, 0
        %s206 = sadd.s32 %s205, %s203
        %s207 = smul.addr %s206, 8
        %s208 = scalar_lea.vmem %s1, %s207
        %p209 = pneg %p81
        %p210 = pneg %p78
        %p211 = scmp.lt.s32.totalorder %s23, 1
        %s212 = scalar_select %p211, %s23, 1
        %p213 = scmp.lt.s32.totalorder %s25, 0
        %s214 = scalar_select %p213, %s25, 0
        %s215 = sadd.s32 %s214, %s212
        %s216 = scalar_lea.vmem %s2, %s215
        %p217 = pneg %p109
        %p218 = pneg %p106
        %p219 = pneg %p139
        %p220 = pneg %p136
        %s221 = sand.u32 %s126, 1
        %s222 = scalar_lea.sflag [#allocation3], %s221
        %s223 = sand.u32 %s126, 1
        %s224 = smul.addr %s223, 8
        %s225 = scalar_lea.vmem [#allocation5], %s224
        %p226 = scmp.lt.s32.totalorder %s23, 1
        %s227 = scalar_select %p226, %s23, 1
        %p228 = scmp.lt.s32.totalorder %s24, 0
        %s229 = scalar_select %p228, %s24, 0
        %s230 = sadd.s32 %s229, %s227
        %s231 = smul.addr %s230, 8
        %s232 = scalar_lea.vmem %s1, %s231
        %p233 = scmp.lt.s32.totalorder %s23, 1
        %s234 = scalar_select %p233, %s23, 1
        %p235 = scmp.lt.s32.totalorder %s25, 0
        %s236 = scalar_select %p235, %s25, 0
        %s237 = sadd.s32 %s236, %s234
        %s238 = scalar_lea.vmem %s2, %s237
        %s239 = sld [smem:[#allocation2]]
        %s240 = sld [smem:[#allocation2 + $0x1]]
        %s241 = sld [smem:[#allocation2 + $0x2]]
        %v242 = vld [vmem:[%s232] sm:$0xff]
        %v243 = vld [vmem:[%s238] sm:$0x1]
        %245 = vset.pattern.permute.xlu0 0
        %246 = vperm.xlu0 %245, %v242
        %v247 = vpop.permute.xlu0 %246
        %v250 = vlaneseq
        %v251 = vshrl.u32 %v250, 7
        %v252 = vsub.s32 0, %v251
        %v253 = vrot.slane %v243, %v252
        %v255 = vsub.f32 %v247, %v253
        %v256 = vmul.f32 %v255, %v255
        %v257 = vstv %s239
        %v258 = vmul.f32 %v257, %v256
        %v259 = vmul.f32 %v258, 1.442695
        %v260 = vpow.pop %v259
        %v261 = vstv %s240
        %v262 = vmul.f32 %v261, %v260
        %s263 = smul.u32 %s24, 8
        %s264 = smul.u32 %s25, 8
        %s265 = sadd.s32 %s264, 8
        %p266 = scmp.lt.s32.totalorder %s263, %s265
        %s267 = sadd.s32 %s263, 8
        %p268 = scmp.lt.s32.totalorder %s264, %s267
        %p269 = pnand %p266, %p268
        %p270 = pneg %p269
        %p271 = scmp.ne.f32.partialorder %s241, 0.0
        %p272 = pnand %p271, %p270
        %p273 = pneg %p272
        // Predicated region
        $region37: #{tpu_custom_call.1} parent=31 // pred_check
          _
        $region38: #{tpu_custom_call.1} parent=31 // pred_check_branch
          %275 = sbr.rel (%p272) target = $region40
        $region39: #{tpu_custom_call.1} parent=31 // pred_region
          %v276 = vlaneseq
          %v277 = vshrl.u32 %v276, 7
          %v278 = vlaneseq
          %v279 = vand.u32 %v278, 127
          %v280 = vsub.s32 %v277, %v279
          %s281 = ssub.s32 %s264, %s263
          %v282 = vstv %s281
          %vm283 = vcmp.eq.s32.totalorder %v280, %v282
          %v284 = vstv %s241
          %v285 = vsel %vm283, %v284, 0.0
          %v286 = vadd.f32 %v262, %v285
          %vm287 = vcmask 64512
          %288 = vst.msk [vmem:[%s225] sm:$0xff] %vm287, %v286
        $region40: #{tpu_custom_call.1} parent=31 // pred_fallthru
          _
        %p289 = pneg %p273
        // Predicated region
        $region41: #{tpu_custom_call.1} parent=31 // pred_check
          _
        $region42: #{tpu_custom_call.1} parent=31 // pred_check_branch
          %291 = sbr.rel (%p273) target = $region44
        $region43: #{tpu_custom_call.1} parent=31 // pred_region
          %vm292 = vcmask 64512
          %293 = vst.msk [vmem:[%s225] sm:$0xff] %vm292, %v262
        $region44: #{tpu_custom_call.1} parent=31 // pred_fallthru
          _
        %s294 = sand.u32 %s126, 1
        %s295 = scalar_lea.sflag [#allocation3], %s294
        %s296 = sand.u32 %s126, 1
        %s297 = smul.addr %s296, 8
        %s298 = scalar_lea.vmem [#allocation5], %s297
        // Predicated region
        $region45: #{tpu_custom_call.1} parent=31 // pred_check
          %p299 = pneg %p136
        $region46: #{tpu_custom_call.1} parent=31 // pred_check_branch
          %301 = sbr.rel (%p299) target = $region48
        $region47: #{tpu_custom_call.1} parent=31 // pred_region
          %s303 = ssub.s32 128, 128
          %304 = vsyncadd %s295, %s303
          %s305 = sadd.s32 %s25, %s24
          %s306 = sadd.s32 %s305, %s23
          %s307 = smul.addr %s306, 128
          %s308 = scalar_lea.hbm %s3, %s307
          %s310 = sshll.u32 %s298, 4
          %s311 = int_to_ptr.vmem [resolvable:$true] %s310
          %313 = dma.vmem_to_hbm [thread:$0]  %s311, 128, %s308, %s295
        $region48: #{tpu_custom_call.1} parent=31 // pred_fallthru
          _
      $region32: #{tpu_custom_call.1} parent=5 // pred_fallthru
        _
      %p314 = scmp.le.s32.totalorder 2, %s13
      // Predicated region
      $region49: #{tpu_custom_call.1} parent=5 // pred_check
        %p315 = pneg %p314
      $region50: #{tpu_custom_call.1} parent=5 // pred_check_branch
        %317 = sbr.rel (%p315) target = $region52
      $region51: #{tpu_custom_call.1} parent=5 // pred_region
        %s318 = ssub.s32 %s13, 2
        // Predicated region
        $region53: #{tpu_custom_call.1} parent=51 // pred_check
          %p319 = pneg %p142
        $region54: #{tpu_custom_call.1} parent=51 // pred_check_branch
          %321 = sbr.rel (%p319) target = $region56
        $region55: #{tpu_custom_call.1} parent=51 // pred_region
          %s322 = sand.u32 %s127, 1
          %s323 = scalar_lea.sflag [#allocation3], %s322
          %s324 = sand.u32 %s127, 1
          %s325 = smul.addr %s324, 8
          %s326 = scalar_lea.vmem [#allocation5], %s325
          %327 = dma.done %s323, 128
        $region56: #{tpu_custom_call.1} parent=51 // pred_fallthru
          _
      $region52: #{tpu_custom_call.1} parent=5 // pred_fallthru
        _
    $region6: #{tpu_custom_call.1} parent=1 // loop_footer
      %s17 = sadd.s32 1, %s13
    $region7: #{tpu_custom_call.1} parent=1 // loop_footer_branch
      %12 = sbr.rel target = $region3
    $region8: #{tpu_custom_call.1} parent=1 // loop_exit
      _
    %328 = vsyncpa [#allocation3], 1
    %s329 = scalar_lea.sflag [#allocation3], 1
    %330 = vsyncpa %s329, 1
    %331 = vsyncpa [#allocation4], 1
    %s332 = scalar_lea.sflag [#allocation4], 1
    %333 = vsyncpa %s332, 1

</llo_original>
